<compile_context>
chip_gen: v6e
topology: v6e:2x2x1
jax: 0.10.0
libtpu: 0.0.40
codegen_flags: <defaults>
</compile_context>

<pallas_src>
import functools

import jax
import jax.numpy as jnp
import numpy as np
from jax.experimental import pallas as pl
from jax.experimental.pallas import tpu as pltpu


def _round_up(x, m):
    return ((x + m - 1) // m) * m


def _pick_tf(d_ff, d_model_p, tm, itemsize, budget=40 << 20):
    """Largest lane-aligned d_ff chunk whose double-buffered footprint fits."""
    cands = [c for c in (2048, 1024, 512, 256, 128) if c <= d_ff and d_ff % c == 0]
    cands = cands or [d_ff]          # block == full dim is always layout-legal
    for tf in cands:
        need = (2 * tm * d_model_p * itemsize          # x tile (double-buffered)
                + 2 * 2 * d_model_p * tf * itemsize    # w1^T / w3^T chunks
                + 2 * tf * d_model_p * itemsize        # w2^T chunk
                + 2 * tm * d_model_p * itemsize        # out tile
                + tm * d_model_p * 4                   # f32 accumulator
                + 3 * tm * tf * 4)                     # h1/h3/gated f32 temps
        if need <= budget:
            return tf
    return cands[-1]


def _swiglu_ffn_kernel(x_ref, w1t_ref, w3t_ref, w2t_ref, o_ref, *scratch,
                       single_chunk):
    # x_ref:   (tm, d_model_p)     row tile (same block across the d_ff axis)
    # w1t_ref: (d_model_p, tf)     w1_chunk^T (pre-transposed)
    # w3t_ref: (d_model_p, tf)     w3_chunk^T (pre-transposed)
    # w2t_ref: (tf, d_model_p)     w2_chunk^T (pre-transposed)
    # o_ref:   (tm, d_model_p)
    # scratch: () if single_chunk else (f32 (tm, d_model_p) accumulator,)
    x = x_ref[...]
    h1 = jnp.dot(x, w1t_ref[...], preferred_element_type=jnp.float32)   # MXU
    h3 = jnp.dot(x, w3t_ref[...], preferred_element_type=jnp.float32)   # MXU
    gated = h1 * jax.nn.sigmoid(h1) * h3                                # VPU/EUP
    partial = jnp.dot(gated.astype(w2t_ref.dtype), w2t_ref[...],
                      preferred_element_type=jnp.float32)               # MXU

    if single_chunk:
        o_ref[...] = partial.astype(o_ref.dtype)
    else:
        acc_ref, = scratch
        j = pl.program_id(1)

        @pl.when(j == 0)
        def _():
            acc_ref[...] = jnp.zeros_like(acc_ref)

        acc_ref[...] += partial

        @pl.when(j == pl.num_programs(1) - 1)
        def _():
            o_ref[...] = acc_ref[...].astype(o_ref.dtype)


@functools.partial(jax.jit, static_argnames=("tm", "tf", "mxu_dtype"))
def positionwise_feedforward(x, w1, w2, w3, *, tm=None, tf=None, mxu_dtype=None):
    """x: [batch, seq, d_model] -> [batch, seq, d_model]."""
    batch, seq, d_model = x.shape
    d_ff = w1.shape[0]
    out_dtype = x.dtype

    if mxu_dtype is not None:       # bf16 MXU path, f32 accumulation in-kernel
        x = x.astype(mxu_dtype)
        w1 = w1.astype(mxu_dtype)
        w2 = w2.astype(mxu_dtype)
        w3 = w3.astype(mxu_dtype)

    itemsize = jnp.dtype(x.dtype).itemsize
    out_itemsize = jnp.dtype(out_dtype).itemsize
    sub = 16 if itemsize == 2 else 8          # sublane packing multiple

    # --- lane-dense last dim ---
    d_model_p = _round_up(d_model, 128)

    # --- row (M) tiling ---
    M = batch * seq
    if tm is None:
        tm = min(256, _round_up(M, sub))
    tm = max(_round_up(tm, sub), sub)
    M_pad = _round_up(M, tm)                  # ragged rows handled by zero padding

    # --- d_ff (reduction) tiling ---
    if tf is None:
        tf = _pick_tf(d_ff, d_model_p, tm, itemsize)
    if d_ff % tf != 0:
        raise ValueError(f"tf={tf} must divide d_ff={d_ff}")
    nff = d_ff // tf
    single_chunk = (nff == 1)

    # --- wrapper-side layout prep (done once per call, outside the kernel) ---
    x2d = x.reshape(M, d_model)
    if M_pad != M or d_model_p != d_model:
        x2d = jnp.pad(x2d, ((0, M_pad - M), (0, d_model_p - d_model)))

    # Pre-transposed weights: contraction dim is the leading axis of the RHS.
    w1t = jnp.pad(w1, ((0, 0), (0, d_model_p - d_model))).T    # (d_model_p, d_ff)
    w3t = jnp.pad(w3, ((0, 0), (0, d_model_p - d_model))).T    # (d_model_p, d_ff)
    w2t = jnp.pad(w2, ((0, d_model_p - d_model), (0, 0))).T    # (d_ff, d_model_p)

    grid = (M_pad // tm, nff)

    # Scoped-VMEM budget: double-buffered pipelined operands + scratch + temps.
    acc_bytes = 0 if single_chunk else tm * d_model_p * 4
    need = (2 * tm * d_model_p * itemsize          # x tile
            + 2 * 2 * d_model_p * tf * itemsize    # w1^T / w3^T chunks
            + 2 * tf * d_model_p * itemsize        # w2^T chunk
            + 2 * tm * d_model_p * out_itemsize    # out tile
            + acc_bytes
            + 3 * tm * tf * 4)                     # h1/h3/gated f32 temps
    vmem_limit = int(min(max(need + (4 << 20), 16 << 20), 64 << 20))

    cost = pl.CostEstimate(
        flops=6 * M * d_model * d_ff,
        transcendentals=M * d_ff,
        bytes_accessed=(2 * M * d_model * itemsize + 3 * d_model * d_ff * itemsize))

    scratch_shapes = [] if single_chunk else [pltpu.VMEM((tm, d_model_p), jnp.float32)]

    out2d = pl.pallas_call(
        functools.partial(_swiglu_ffn_kernel, single_chunk=single_chunk),
        out_shape=jax.ShapeDtypeStruct((M_pad, d_model_p), out_dtype),
        grid_spec=pltpu.PrefetchScalarGridSpec(
            num_scalar_prefetch=0,
            grid=grid,
            in_specs=[
                pl.BlockSpec((tm, d_model_p), lambda i, j: (i, 0)),    # x rows
                pl.BlockSpec((d_model_p, tf), lambda i, j: (0, j)),    # w1^T chunk
                pl.BlockSpec((d_model_p, tf), lambda i, j: (0, j)),    # w3^T chunk
                pl.BlockSpec((tf, d_model_p), lambda i, j: (j, 0)),    # w2^T chunk
            ],
            out_specs=pl.BlockSpec((tm, d_model_p), lambda i, j: (i, 0)),
            scratch_shapes=scratch_shapes,
        ),
        compiler_params=pltpu.CompilerParams(
            dimension_semantics=("parallel", "arbitrary"),
            vmem_limit_bytes=vmem_limit),
        cost_estimate=cost,
    )(x2d, w1t, w3t, w2t)

    return out2d[:M, :d_model].reshape(batch, seq, d_model)


def init_weights(key, d_model, d_ff, dtype=jnp.float32):
    """Truncated-normal init matching the module (mean 0, std sigma, +/- 3 sigma)."""
    sigma = np.sqrt(2.0 / (d_ff + d_model))
    k1, k2, k3 = jax.random.split(key, 3)
    w1 = sigma * jax.random.truncated_normal(k1, -3.0, 3.0, (d_ff, d_model), dtype)
    w2 = sigma * jax.random.truncated_normal(k2, -3.0, 3.0, (d_model, d_ff), dtype)
    w3 = sigma * jax.random.truncated_normal(k3, -3.0, 3.0, (d_ff, d_model), dtype)
    return w1, w2, w3


if __name__ == "__main__":
    # Small shapes that exercise: ragged rows (M=120 -> padded 128), sub-128
    # d_model (64 -> lane-padded 128), a 2-chunk d_ff reduction (256/128), and
    # the single-chunk fast path (auto tiling).
    batch, seq, d_model = 2, 60, 64
    d_ff = 256

    key = jax.random.PRNGKey(0)
    kx, kw = jax.random.split(key)
    x = jax.random.normal(kx, (batch, seq, d_model), dtype=jnp.float32)
    w1, w2, w3 = init_weights(kw, d_model, d_ff, dtype=jnp.float32)

    # Pure-JAX reference (same math as the PyTorch forward).
    h1 = jnp.einsum("bsd,fd->bsf", x, w1)
    ref = jnp.einsum(
        "bsf,df->bsd",
        (jax.nn.sigmoid(h1) * h1) * jnp.einsum("bsd,fd->bsf", x, w3),
        w2)

    # f32 path, explicit tiling (2-chunk reduction over d_ff).
    out = positionwise_feedforward(x, w1, w2, w3, tm=64, tf=128)
    out = jax.block_until_ready(out)
    np.testing.assert_allclose(np.asarray(out), np.asarray(ref),
                               rtol=1e-5, atol=1e-5)

    # f32 path, auto tiling (single-chunk fast path, no accumulator scratch).
    out_auto = positionwise_feedforward(x, w1, w2, w3)
    out_auto = jax.block_until_ready(out_auto)
    np.testing.assert_allclose(np.asarray(out_auto), np.asarray(ref),
                               rtol=1e-5, atol=1e-5)

    # bf16 MXU path (f32 accumulation; looser tolerance for bf16 quantization).
    out_bf16 = positionwise_feedforward(x, w1, w2, w3, tm=64, tf=128,
                                        mxu_dtype=jnp.bfloat16)
    out_bf16 = jax.block_until_ready(out_bf16)
    np.testing.assert_allclose(np.asarray(out_bf16), np.asarray(ref),
                               rtol=5e-2, atol=5e-2)

    print("KERNEL_OK")
</pallas_src>

<mosaic_0001>
module attributes {stable_mosaic.version = 11 : i64} {
  func.func @_swiglu_ffn_kernel(%arg0: i32, %arg1: i32, %arg2: memref<64x128xf32, #tpu.memory_space<vmem>>, %arg3: memref<128x128xf32, #tpu.memory_space<vmem>>, %arg4: memref<128x128xf32, #tpu.memory_space<vmem>>, %arg5: memref<128x128xf32, #tpu.memory_space<vmem>>, %arg6: memref<64x128xf32, #tpu.memory_space<vmem>>, %arg7: memref<64x128xf32, #tpu.memory_space<vmem>>) attributes {dimension_semantics = [#tpu.dimension_semantics<parallel>, #tpu.dimension_semantics<arbitrary>], iteration_bounds = array<i64: 2, 2>, scalar_prefetch = 0 : i64, scratch_operands = 1 : i64, tpu.core_type = #tpu.core_type<tc>, window_params = [{transform_indices = @transform_0, window_bounds = array<i64: 64, 128>}, {transform_indices = @transform_1, window_bounds = array<i64: 128, 128>}, {transform_indices = @transform_2, window_bounds = array<i64: 128, 128>}, {transform_indices = @transform_3, window_bounds = array<i64: 128, 128>}, {transform_indices = @transform_4, window_bounds = array<i64: 64, 128>}]} {
    %c0 = arith.constant 0 : index
    %c0_0 = arith.constant 0 : index
    %0 = vector.load %arg2[%c0, %c0_0] : memref<64x128xf32, #tpu.memory_space<vmem>>, vector<64x128xf32>
    %c0_1 = arith.constant 0 : index
    %c0_2 = arith.constant 0 : index
    %1 = vector.load %arg3[%c0_1, %c0_2] : memref<128x128xf32, #tpu.memory_space<vmem>>, vector<128x128xf32>
    %cst = arith.constant dense<0.000000e+00> : vector<64x128xf32>
    %2 = tpu.matmul %0, %1, %cst {dimension_numbers = #tpu.dot_dimension_numbers<[1], [0], [0], [1], [0, 0, 1, 1], [], []>} : vector<64x128xf32>, vector<128x128xf32>, vector<64x128xf32> -> vector<64x128xf32>
    %c0_3 = arith.constant 0 : index
    %c0_4 = arith.constant 0 : index
    %3 = vector.load %arg4[%c0_3, %c0_4] : memref<128x128xf32, #tpu.memory_space<vmem>>, vector<128x128xf32>
    %cst_5 = arith.constant dense<0.000000e+00> : vector<64x128xf32>
    %4 = tpu.matmul %0, %3, %cst_5 {dimension_numbers = #tpu.dot_dimension_numbers<[1], [0], [0], [1], [0, 0, 1, 1], [], []>} : vector<64x128xf32>, vector<128x128xf32>, vector<64x128xf32> -> vector<64x128xf32>
    %5 = arith.negf %2 : vector<64x128xf32>
    %6 = math.exp %5 : vector<64x128xf32>
    %cst_6 = arith.constant 1.000000e+00 : f32
    %7 = vector.broadcast %cst_6 : f32 to vector<64x128xf32>
    %8 = arith.addf %7, %6 : vector<64x128xf32>
    %9 = arith.divf %7, %8 : vector<64x128xf32>
    %10 = arith.mulf %2, %9 : vector<64x128xf32>
    %11 = arith.mulf %10, %4 : vector<64x128xf32>
    %c0_7 = arith.constant 0 : index
    %c0_8 = arith.constant 0 : index
    %12 = vector.load %arg5[%c0_7, %c0_8] : memref<128x128xf32, #tpu.memory_space<vmem>>, vector<128x128xf32>
    %cst_9 = arith.constant dense<0.000000e+00> : vector<64x128xf32>
    %13 = tpu.matmul %11, %12, %cst_9 {dimension_numbers = #tpu.dot_dimension_numbers<[1], [0], [0], [1], [0, 0, 1, 1], [], []>} : vector<64x128xf32>, vector<128x128xf32>, vector<64x128xf32> -> vector<64x128xf32>
    %c0_i32 = arith.constant 0 : i32
    %14 = arith.cmpi eq, %arg1, %c0_i32 : i32
    %15 = arith.extui %14 : i1 to i32
    %c0_i32_10 = arith.constant 0 : i32
    %16 = arith.cmpi ne, %15, %c0_i32_10 : i32
    scf.if %16 {
      %cst_16 = arith.constant 0.000000e+00 : f32
      %23 = vector.broadcast %cst_16 : f32 to vector<64x128xf32>
      %c0_17 = arith.constant 0 : index
      %c0_18 = arith.constant 0 : index
      %24 = vector.load %arg7[%c0_17, %c0_18] : memref<64x128xf32, #tpu.memory_space<vmem>>, vector<64x128xf32>
      tpu.vector_store %arg7[%c0_17, %c0_18], %23 {strides = array<i32>} : memref<64x128xf32, #tpu.memory_space<vmem>>, vector<64x128xf32>,
    } else {
    }
    %c0_11 = arith.constant 0 : index
    %c0_12 = arith.constant 0 : index
    %17 = vector.load %arg7[%c0_11, %c0_12] : memref<64x128xf32, #tpu.memory_space<vmem>>, vector<64x128xf32>
    %18 = arith.addf %17, %13 : vector<64x128xf32>
    %c0_13 = arith.constant 0 : index
    %c0_14 = arith.constant 0 : index
    %19 = vector.load %arg7[%c0_13, %c0_14] : memref<64x128xf32, #tpu.memory_space<vmem>>, vector<64x128xf32>
    tpu.vector_store %arg7[%c0_13, %c0_14], %18 {strides = array<i32>} : memref<64x128xf32, #tpu.memory_space<vmem>>, vector<64x128xf32>,
    %c1_i32 = arith.constant 1 : i32
    %20 = arith.cmpi eq, %arg1, %c1_i32 : i32
    %21 = arith.extui %20 : i1 to i32
    %c0_i32_15 = arith.constant 0 : i32
    %22 = arith.cmpi ne, %21, %c0_i32_15 : i32
    scf.if %22 {
      %c0_16 = arith.constant 0 : index
      %c0_17 = arith.constant 0 : index
      %23 = vector.load %arg7[%c0_16, %c0_17] : memref<64x128xf32, #tpu.memory_space<vmem>>, vector<64x128xf32>
      %c0_18 = arith.constant 0 : index
      %c0_19 = arith.constant 0 : index
      %24 = vector.load %arg6[%c0_18, %c0_19] : memref<64x128xf32, #tpu.memory_space<vmem>>, vector<64x128xf32>
      tpu.vector_store %arg6[%c0_18, %c0_19], %23 {strides = array<i32>} : memref<64x128xf32, #tpu.memory_space<vmem>>, vector<64x128xf32>,
    } else {
    }
    return
  }
  func.func @transform_0(%arg0: i32, %arg1: i32) -> (i32, i32) {
    %c0_i32 = arith.constant 0 : i32
    %c0_i32_0 = arith.constant 0 : i32
    return %arg0, %c0_i32 : i32, i32
  }
  func.func @transform_1(%arg0: i32, %arg1: i32) -> (i32, i32) {
    %c0_i32 = arith.constant 0 : i32
    %c0_i32_0 = arith.constant 0 : i32
    return %c0_i32, %arg1 : i32, i32
  }
  func.func @transform_2(%arg0: i32, %arg1: i32) -> (i32, i32) {
    %c0_i32 = arith.constant 0 : i32
    %c0_i32_0 = arith.constant 0 : i32
    return %c0_i32, %arg1 : i32, i32
  }
  func.func @transform_3(%arg0: i32, %arg1: i32) -> (i32, i32) {
    %c0_i32 = arith.constant 0 : i32
    %c0_i32_0 = arith.constant 0 : i32
    return %arg1, %c0_i32 : i32, i32
  }
  func.func @transform_4(%arg0: i32, %arg1: i32) -> (i32, i32) {
    %c0_i32 = arith.constant 0 : i32
    %c0_i32_0 = arith.constant 0 : i32
    return %arg0, %c0_i32 : i32, i32
  }
}

</mosaic_0001>

<llo_original>
// kernel: positionwise_feedforward.1
$region0: #{positionwise_feedforward.1}
  #allocation0 [shape = 'u32[]', space=smem, size = 0x4, offset = 0x4, fixed_abs, tag = 'smem constant byte address 0x4 - core index']
  #allocation1 [shape = 'u32[144,128]{1,0:T(1,128)}', space=vmem, size = 0x12000, scoped, tag = 'internal scratch']
  #allocation2 [shape = 'f32[64,128]{1,0:T(8,128)}', space=vmem, size = 0x8000, scoped, tag = 'scratch operand']
  %s0 = inlined_call_operand.vmem [shape: f32[128,128], index: 0, kind: input, shape index: {}]
  %s1 = inlined_call_operand.vmem [shape: f32[128,256], index: 1, kind: input, shape index: {}]
  %s2 = inlined_call_operand.vmem [shape: f32[128,256], index: 2, kind: input, shape index: {}]
  %s3 = inlined_call_operand.vmem [shape: f32[256,128], index: 3, kind: input, shape index: {}]
  %s4 = inlined_call_operand.vmem [shape: f32[128,128], index: 4, kind: output, shape index: {}]
  %s5 = sld [smem:[#allocation0]]
  $region133: #{positionwise_feedforward.1} parent=0
    _
  %s7 = ssub.s32 1, %s5
  %s8 = scalar_select 0, %s7, %s5
  $region1: #{positionwise_feedforward.1} parent=0
    #allocation3 [shape = 'u8[131072]{0}', space=vmem, size = 0x20000, scoped, tag = 'input window, operand 1']
    #allocation4 [shape = 'u8[131072]{0}', space=vmem, size = 0x20000, scoped, tag = 'input window, operand 2']
    loop: start=0, step=1, limit=6
    $region2: #{positionwise_feedforward.1} parent=1 // loop_pre_header
      _
    $region3: #{positionwise_feedforward.1} parent=1 // loop_header
      %s10 = sphi 0, %s14
      %p11 = scmp.ge.s32.totalorder %s10, 6
      %s17 = sphi 0, %s29
      %s18 = sphi 0, %s25
      %s19 = sphi 0, %s17
      %s20 = sphi 0, %s18
      %s21 = sphi 0, %s19
      %s22 = sphi 0, %s20
      %s32 = sphi 0, %s34
      %s35 = sphi 0, %s32
      %s36 = sphi 0, %s35
      %s52 = sphi 0, %s36
      %s58 = sphi 0, %s60
      %s61 = sphi 0, %s58
      %s62 = sphi 0, %s61
      %s78 = sphi 0, %s62
      %s84 = sphi 0, %s86
      %s87 = sphi 0, %s84
      %s88 = sphi 0, %s87
      %s104 = sphi 0, %s88
      %s110 = sphi 0, %s112
      %s113 = sphi 0, %s110
      %s114 = sphi 0, %s113
      %s130 = sphi 0, %s114
      %s136 = sphi 0, %s138
      %s139 = sphi 0, %s136
      %s140 = sphi 0, %s139
      %s156 = sphi 0, %s140
    $region4: #{positionwise_feedforward.1} parent=1 // loop_header_branch
      %13 = sbr.rel (%p11) target = $region8
    $region5: #{positionwise_feedforward.1} parent=1 // loop_body
      %s15 = ssub.s32 %s10, 1
      %s16 = ssub.s32 %s10, 2
      %s23 = sadd.s32 1, %s18
      %p24 = scmp.ge.s32.totalorder %s23, 2
      %s25 = scalar_select %p24, 0, %s23
      %s26 = sadd.s32 1, %s17
      %s27 = scalar_select %p24, %s26, %s17
      %p28 = scmp.ge.s32.totalorder %s27, 2
      %s29 = scalar_select %p28, 0, %s27
      %s30 = ssub.s32 %s17, %s29
      %p31 = scmp.eq.s32.totalorder %s30, 0
      %s33 = sadd.s32 %s32, 1
      %s34 = scalar_select %p31, %s32, %s33
      %p37 = pneg %p31
      %p38 = scmp.eq.s32.totalorder %s10, 3
      %p39 = por %p37, %p38
      %p40 = scmp.ne.s32.totalorder %s32, %s35
      %p41 = scmp.eq.s32.totalorder %s10, 0
      %p42 = por %p40, %p41
      %p43 = scmp.ne.s32.totalorder %s32, %s35
      %p44 = scmp.eq.s32.totalorder %s15, 3
      %p45 = por %p43, %p44
      %p46 = scmp.ne.s32.totalorder %s35, %s36
      %p47 = scmp.eq.s32.totalorder %s15, 0
      %p48 = por %p46, %p47
      %p49 = scmp.ne.s32.totalorder %s35, %s36
      %p50 = scmp.eq.s32.totalorder %s16, 3
      %p51 = por %p49, %p50
      %p53 = scmp.ne.s32.totalorder %s36, %s52
      %p54 = scmp.eq.s32.totalorder %s16, 0
      %p55 = por %p53, %p54
      %s56 = ssub.s32 %s18, %s25
      %p57 = scmp.eq.s32.totalorder %s56, 0
      %s59 = sadd.s32 %s58, 1
      %s60 = scalar_select %p57, %s58, %s59
      %p63 = pneg %p57
      %p64 = scmp.eq.s32.totalorder %s10, 3
      %p65 = por %p63, %p64
      %p66 = scmp.ne.s32.totalorder %s58, %s61
      %p67 = scmp.eq.s32.totalorder %s10, 0
      %p68 = por %p66, %p67
      %p69 = scmp.ne.s32.totalorder %s58, %s61
      %p70 = scmp.eq.s32.totalorder %s15, 3
      %p71 = por %p69, %p70
      %p72 = scmp.ne.s32.totalorder %s61, %s62
      %p73 = scmp.eq.s32.totalorder %s15, 0
      %p74 = por %p72, %p73
      %p75 = scmp.ne.s32.totalorder %s61, %s62
      %p76 = scmp.eq.s32.totalorder %s16, 3
      %p77 = por %p75, %p76
      %p79 = scmp.ne.s32.totalorder %s62, %s78
      %p80 = scmp.eq.s32.totalorder %s16, 0
      %p81 = por %p79, %p80
      %s82 = ssub.s32 %s18, %s25
      %p83 = scmp.eq.s32.totalorder %s82, 0
      %s85 = sadd.s32 %s84, 1
      %s86 = scalar_select %p83, %s84, %s85
      %p89 = pneg %p83
      %p90 = scmp.eq.s32.totalorder %s10, 3
      %p91 = por %p89, %p90
      %p92 = scmp.ne.s32.totalorder %s84, %s87
      %p93 = scmp.eq.s32.totalorder %s10, 0
      %p94 = por %p92, %p93
      %p95 = scmp.ne.s32.totalorder %s84, %s87
      %p96 = scmp.eq.s32.totalorder %s15, 3
      %p97 = por %p95, %p96
      %p98 = scmp.ne.s32.totalorder %s87, %s88
      %p99 = scmp.eq.s32.totalorder %s15, 0
      %p100 = por %p98, %p99
      %p101 = scmp.ne.s32.totalorder %s87, %s88
      %p102 = scmp.eq.s32.totalorder %s16, 3
      %p103 = por %p101, %p102
      %p105 = scmp.ne.s32.totalorder %s88, %s104
      %p106 = scmp.eq.s32.totalorder %s16, 0
      %p107 = por %p105, %p106
      %s108 = ssub.s32 %s18, %s25
      %p109 = scmp.eq.s32.totalorder %s108, 0
      %s111 = sadd.s32 %s110, 1
      %s112 = scalar_select %p109, %s110, %s111
      %p115 = pneg %p109
      %p116 = scmp.eq.s32.totalorder %s10, 3
      %p117 = por %p115, %p116
      %p118 = scmp.ne.s32.totalorder %s110, %s113
      %p119 = scmp.eq.s32.totalorder %s10, 0
      %p120 = por %p118, %p119
      %p121 = scmp.ne.s32.totalorder %s110, %s113
      %p122 = scmp.eq.s32.totalorder %s15, 3
      %p123 = por %p121, %p122
      %p124 = scmp.ne.s32.totalorder %s113, %s114
      %p125 = scmp.eq.s32.totalorder %s15, 0
      %p126 = por %p124, %p125
      %p127 = scmp.ne.s32.totalorder %s113, %s114
      %p128 = scmp.eq.s32.totalorder %s16, 3
      %p129 = por %p127, %p128
      %p131 = scmp.ne.s32.totalorder %s114, %s130
      %p132 = scmp.eq.s32.totalorder %s16, 0
      %p133 = por %p131, %p132
      %s134 = ssub.s32 %s17, %s29
      %p135 = scmp.eq.s32.totalorder %s134, 0
      %s137 = sadd.s32 %s136, 1
      %s138 = scalar_select %p135, %s136, %s137
      %p141 = pneg %p135
      %p142 = scmp.eq.s32.totalorder %s10, 3
      %p143 = por %p141, %p142
      %p144 = scmp.ne.s32.totalorder %s136, %s139
      %p145 = scmp.eq.s32.totalorder %s10, 0
      %p146 = por %p144, %p145
      %p147 = scmp.ne.s32.totalorder %s136, %s139
      %p148 = scmp.eq.s32.totalorder %s15, 3
      %p149 = por %p147, %p148
      %p150 = scmp.ne.s32.totalorder %s139, %s140
      %p151 = scmp.eq.s32.totalorder %s15, 0
      %p152 = por %p150, %p151
      %p153 = scmp.ne.s32.totalorder %s139, %s140
      %p154 = scmp.eq.s32.totalorder %s16, 3
      %p155 = por %p153, %p154
      %p157 = scmp.ne.s32.totalorder %s140, %s156
      %p158 = scmp.eq.s32.totalorder %s16, 0
      %p159 = por %p157, %p158
      %p160 = scmp.le.s32.totalorder 1, %s10
      %p161 = scmp.lt.s32.totalorder %s10, 5
      %p162 = pnand %p160, %p161
      %p163 = pneg %p162
      // Predicated region
      $region9: #{positionwise_feedforward.1} parent=5 // pred_check
        _
      $region10: #{positionwise_feedforward.1} parent=5 // pred_check_branch
        %165 = sbr.rel (%p162) target = $region12
      $region11: #{positionwise_feedforward.1} parent=5 // pred_region
        %s166 = ssub.s32 %s10, 1
      $region12: #{positionwise_feedforward.1} parent=5 // pred_fallthru
        _
      %p167 = scmp.lt.s32.totalorder %s10, 4
      // Predicated region
      $region13: #{positionwise_feedforward.1} parent=5 // pred_check
        %p168 = pneg %p167
      $region14: #{positionwise_feedforward.1} parent=5 // pred_check_branch
        %170 = sbr.rel (%p168) target = $region16
      $region15: #{positionwise_feedforward.1} parent=5 // pred_region
        // Predicated region
        $region17: #{positionwise_feedforward.1} parent=15 // pred_check
          %p171 = pneg %p42
        $region18: #{positionwise_feedforward.1} parent=15 // pred_check_branch
          %173 = sbr.rel (%p171) target = $region20
        $region19: #{positionwise_feedforward.1} parent=15 // pred_region
          %s174 = smul.u32 8, %s17
          %p175 = scmp.lt.s32.totalorder %s174, 15
          %s176 = scalar_select %p175, %s174, 15
          %s177 = smul.addr %s176, 8
          %s178 = scalar_lea.vmem %s0, %s177
          %s179 = smul.u32 8, %s17
        $region20: #{positionwise_feedforward.1} parent=15 // pred_fallthru
          _
        // Predicated region
        $region21: #{positionwise_feedforward.1} parent=15 // pred_check
          %p180 = pneg %p68
        $region22: #{positionwise_feedforward.1} parent=15 // pred_check_branch
          %182 = sbr.rel (%p180) target = $region24
        $region23: #{positionwise_feedforward.1} parent=15 // pred_region
          %s183 = sand.u32 %s58, 1
          %s184 = sand.u32 %s58, 1
          %s185 = smul.addr %s184, 128
          %s186 = scalar_lea.vmem [#allocation3], %s185
          %s187 = smul.addr %s18, 8
          %s188 = scalar_lea.vmem %s1, %s187
          // Predicated region
          $region25: #{positionwise_feedforward.1} parent=23 // pred_check
            _
          $region26: #{positionwise_feedforward.1} parent=23 // pred_check_branch
            %190 = sbr.rel (0) target = $region28
          $region27: #{positionwise_feedforward.1} parent=23 // pred_region
            // Predicated region
            $region29: #{positionwise_feedforward.1} parent=27 // pred_check
              _
            $region30: #{positionwise_feedforward.1} parent=27 // pred_check_branch
              %192 = sbr.rel (0) target = $region32
            $region31: #{positionwise_feedforward.1} parent=27 // pred_region
              // Predicated region
              $region44: #{positionwise_feedforward.1} parent=31 // pred_check
                _
              $region45: #{positionwise_feedforward.1} parent=31 // pred_check_branch
                %238 = sbr.rel (0) target = $region47
              $region46: #{positionwise_feedforward.1} parent=31 // pred_region
                loop: start=0, step=1, limit=1
                $region48: #{positionwise_feedforward.1} parent=46 // loop_pre_header
                  _
                $region49: #{positionwise_feedforward.1} parent=46 // loop_header
                  %s240 = sphi 0, %s244
                  %p241 = scmp.ge.s32.totalorder %s240, 1
                  %s245 = sphi %s188, %s188
                  %s246 = sphi %s186, %s186
                $region50: #{positionwise_feedforward.1} parent=46 // loop_header_branch
                  %243 = sbr.rel (%p241) target = $region54
                $region51: #{positionwise_feedforward.1} parent=46 // loop_body
                  %v247 = vld [vmem:[%s245] sm:$0xff]
                  %248 = vst [vmem:[%s246] sm:$0xff] %v247
                  %v249 = vld [vmem:[%s245 + $0x10] sm:$0xff]
                  %250 = vst [vmem:[%s246 + $0x8] sm:$0xff] %v249
                  %v251 = vld [vmem:[%s245 + $0x20] sm:$0xff]
                  %252 = vst [vmem:[%s246 + $0x10] sm:$0xff] %v251
                  %v253 = vld [vmem:[%s245 + $0x30] sm:$0xff]
                  %254 = vst [vmem:[%s246 + $0x18] sm:$0xff] %v253
                  %v255 = vld [vmem:[%s245 + $0x40] sm:$0xff]
                  %256 = vst [vmem:[%s246 + $0x20] sm:$0xff] %v255
                  %v257 = vld [vmem:[%s245 + $0x50] sm:$0xff]
                  %258 = vst [vmem:[%s246 + $0x28] sm:$0xff] %v257
                  %v259 = vld [vmem:[%s245 + $0x60] sm:$0xff]
                  %260 = vst [vmem:[%s246 + $0x30] sm:$0xff] %v259
                  %v261 = vld [vmem:[%s245 + $0x70] sm:$0xff]
                  %262 = vst [vmem:[%s246 + $0x38] sm:$0xff] %v261
                  %v263 = vld [vmem:[%s245 + $0x80] sm:$0xff]
                  %264 = vst [vmem:[%s246 + $0x40] sm:$0xff] %v263
                  %v265 = vld [vmem:[%s245 + $0x90] sm:$0xff]
                  %266 = vst [vmem:[%s246 + $0x48] sm:$0xff] %v265
                  %v267 = vld [vmem:[%s245 + $0xa0] sm:$0xff]
                  %268 = vst [vmem:[%s246 + $0x50] sm:$0xff] %v267
                  %v269 = vld [vmem:[%s245 + $0xb0] sm:$0xff]
                  %270 = vst [vmem:[%s246 + $0x58] sm:$0xff] %v269
                  %v271 = vld [vmem:[%s245 + $0xc0] sm:$0xff]
                  %272 = vst [vmem:[%s246 + $0x60] sm:$0xff] %v271
                  %v273 = vld [vmem:[%s245 + $0xd0] sm:$0xff]
                  %274 = vst [vmem:[%s246 + $0x68] sm:$0xff] %v273
                  %v275 = vld [vmem:[%s245 + $0xe0] sm:$0xff]
                  %276 = vst [vmem:[%s246 + $0x70] sm:$0xff] %v275
                  %v277 = vld [vmem:[%s245 + $0xf0] sm:$0xff]
                  %278 = vst [vmem:[%s246 + $0x78] sm:$0xff] %v277
                $region52: #{positionwise_feedforward.1} parent=46 // loop_footer
                  %s244 = sadd.s32 1, %s240
                $region53: #{positionwise_feedforward.1} parent=46 // loop_footer_branch
                  %239 = sbr.rel target = $region49
                $region54: #{positionwise_feedforward.1} parent=46 // loop_exit
                  _
              $region47: #{positionwise_feedforward.1} parent=31 // pred_fallthru
                _
              // Predicated region
              $region55: #{positionwise_feedforward.1} parent=31 // pred_check
                _
              $region56: #{positionwise_feedforward.1} parent=31 // pred_check_branch
                %280 = sbr.rel target = $region58
              $region57: #{positionwise_feedforward.1} parent=31 // pred_region
                _
              $region58: #{positionwise_feedforward.1} parent=31 // pred_fallthru
                _
            $region32: #{positionwise_feedforward.1} parent=27 // pred_fallthru
              _
            // Predicated region
            $region33: #{positionwise_feedforward.1} parent=27 // pred_check
              _
            $region34: #{positionwise_feedforward.1} parent=27 // pred_check_branch
              %194 = sbr.rel target = $region36
            $region35: #{positionwise_feedforward.1} parent=27 // pred_region
              %s196 = ssub.s32 256, 1
              loop: start=0, step=1, limit=1
              $region37: #{positionwise_feedforward.1} parent=35 // loop_pre_header
                _
              $region38: #{positionwise_feedforward.1} parent=35 // loop_header
                %s198 = sphi 0, %s202
                %p199 = scmp.ge.s32.totalorder %s198, 1
                %s203 = sphi %s188, %s188
                %s204 = sphi %s186, %s186
              $region39: #{positionwise_feedforward.1} parent=35 // loop_header_branch
                %201 = sbr.rel (%p199) target = $region43
              $region40: #{positionwise_feedforward.1} parent=35 // loop_body
                %v205 = vld [vmem:[%s203] sm:%s196]
                %206 = vst [vmem:[%s204] sm:%s196] %v205
                %v207 = vld [vmem:[%s203 + $0x10] sm:%s196]
                %208 = vst [vmem:[%s204 + $0x8] sm:%s196] %v207
                %v209 = vld [vmem:[%s203 + $0x20] sm:%s196]
                %210 = vst [vmem:[%s204 + $0x10] sm:%s196] %v209
                %v211 = vld [vmem:[%s203 + $0x30] sm:%s196]
                %212 = vst [vmem:[%s204 + $0x18] sm:%s196] %v211
                %v213 = vld [vmem:[%s203 + $0x40] sm:%s196]
                %214 = vst [vmem:[%s204 + $0x20] sm:%s196] %v213
                %v215 = vld [vmem:[%s203 + $0x50] sm:%s196]
                %216 = vst [vmem:[%s204 + $0x28] sm:%s196] %v215
                %v217 = vld [vmem:[%s203 + $0x60] sm:%s196]
                %218 = vst [vmem:[%s204 + $0x30] sm:%s196] %v217
                %v219 = vld [vmem:[%s203 + $0x70] sm:%s196]
                %220 = vst [vmem:[%s204 + $0x38] sm:%s196] %v219
                %v221 = vld [vmem:[%s203 + $0x80] sm:%s196]
                %222 = vst [vmem:[%s204 + $0x40] sm:%s196] %v221
                %v223 = vld [vmem:[%s203 + $0x90] sm:%s196]
                %224 = vst [vmem:[%s204 + $0x48] sm:%s196] %v223
                %v225 = vld [vmem:[%s203 + $0xa0] sm:%s196]
                %226 = vst [vmem:[%s204 + $0x50] sm:%s196] %v225
                %v227 = vld [vmem:[%s203 + $0xb0] sm:%s196]
                %228 = vst [vmem:[%s204 + $0x58] sm:%s196] %v227
                %v229 = vld [vmem:[%s203 + $0xc0] sm:%s196]
                %230 = vst [vmem:[%s204 + $0x60] sm:%s196] %v229
                %v231 = vld [vmem:[%s203 + $0xd0] sm:%s196]
                %232 = vst [vmem:[%s204 + $0x68] sm:%s196] %v231
                %v233 = vld [vmem:[%s203 + $0xe0] sm:%s196]
                %234 = vst [vmem:[%s204 + $0x70] sm:%s196] %v233
                %v235 = vld [vmem:[%s203 + $0xf0] sm:%s196]
                %236 = vst [vmem:[%s204 + $0x78] sm:%s196] %v235
              $region41: #{positionwise_feedforward.1} parent=35 // loop_footer
                %s202 = sadd.s32 1, %s198
              $region42: #{positionwise_feedforward.1} parent=35 // loop_footer_branch
                %197 = sbr.rel target = $region38
              $region43: #{positionwise_feedforward.1} parent=35 // loop_exit
                _
            $region36: #{positionwise_feedforward.1} parent=27 // pred_fallthru
              _
          $region28: #{positionwise_feedforward.1} parent=23 // pred_fallthru
            _
          %281 = vnop
        $region24: #{positionwise_feedforward.1} parent=15 // pred_fallthru
          _
        // Predicated region
        $region59: #{positionwise_feedforward.1} parent=15 // pred_check
          %p282 = pneg %p94
        $region60: #{positionwise_feedforward.1} parent=15 // pred_check_branch
          %284 = sbr.rel (%p282) target = $region62
        $region61: #{positionwise_feedforward.1} parent=15 // pred_region
          %s285 = sand.u32 %s84, 1
          %s286 = sand.u32 %s84, 1
          %s287 = smul.addr %s286, 128
          %s288 = scalar_lea.vmem [#allocation4], %s287
          %s289 = smul.addr %s18, 8
          %s290 = scalar_lea.vmem %s2, %s289
          // Predicated region
          $region63: #{positionwise_feedforward.1} parent=61 // pred_check
            _
          $region64: #{positionwise_feedforward.1} parent=61 // pred_check_branch
            %292 = sbr.rel (0) target = $region66
          $region65: #{positionwise_feedforward.1} parent=61 // pred_region
            // Predicated region
            $region67: #{positionwise_feedforward.1} parent=65 // pred_check
              _
            $region68: #{positionwise_feedforward.1} parent=65 // pred_check_branch
              %294 = sbr.rel (0) target = $region70
            $region69: #{positionwise_feedforward.1} parent=65 // pred_region
              // Predicated region
              $region82: #{positionwise_feedforward.1} parent=69 // pred_check
                _
              $region83: #{positionwise_feedforward.1} parent=69 // pred_check_branch
                %340 = sbr.rel (0) target = $region85
              $region84: #{positionwise_feedforward.1} parent=69 // pred_region
                loop: start=0, step=1, limit=1
                $region86: #{positionwise_feedforward.1} parent=84 // loop_pre_header
                  _
                $region87: #{positionwise_feedforward.1} parent=84 // loop_header
                  %s342 = sphi 0, %s346
                  %p343 = scmp.ge.s32.totalorder %s342, 1
                  %s347 = sphi %s290, %s290
                  %s348 = sphi %s288, %s288
                $region88: #{positionwise_feedforward.1} parent=84 // loop_header_branch
                  %345 = sbr.rel (%p343) target = $region92
                $region89: #{positionwise_feedforward.1} parent=84 // loop_body
                  %v349 = vld [vmem:[%s347] sm:$0xff]
                  %350 = vst [vmem:[%s348] sm:$0xff] %v349
                  %v351 = vld [vmem:[%s347 + $0x10] sm:$0xff]
                  %352 = vst [vmem:[%s348 + $0x8] sm:$0xff] %v351
                  %v353 = vld [vmem:[%s347 + $0x20] sm:$0xff]
                  %354 = vst [vmem:[%s348 + $0x10] sm:$0xff] %v353
                  %v355 = vld [vmem:[%s347 + $0x30] sm:$0xff]
                  %356 = vst [vmem:[%s348 + $0x18] sm:$0xff] %v355
                  %v357 = vld [vmem:[%s347 + $0x40] sm:$0xff]
                  %358 = vst [vmem:[%s348 + $0x20] sm:$0xff] %v357
                  %v359 = vld [vmem:[%s347 + $0x50] sm:$0xff]
                  %360 = vst [vmem:[%s348 + $0x28] sm:$0xff] %v359
                  %v361 = vld [vmem:[%s347 + $0x60] sm:$0xff]
                  %362 = vst [vmem:[%s348 + $0x30] sm:$0xff] %v361
                  %v363 = vld [vmem:[%s347 + $0x70] sm:$0xff]
                  %364 = vst [vmem:[%s348 + $0x38] sm:$0xff] %v363
                  %v365 = vld [vmem:[%s347 + $0x80] sm:$0xff]
                  %366 = vst [vmem:[%s348 + $0x40] sm:$0xff] %v365
                  %v367 = vld [vmem:[%s347 + $0x90] sm:$0xff]
                  %368 = vst [vmem:[%s348 + $0x48] sm:$0xff] %v367
                  %v369 = vld [vmem:[%s347 + $0xa0] sm:$0xff]
                  %370 = vst [vmem:[%s348 + $0x50] sm:$0xff] %v369
                  %v371 = vld [vmem:[%s347 + $0xb0] sm:$0xff]
                  %372 = vst [vmem:[%s348 + $0x58] sm:$0xff] %v371
                  %v373 = vld [vmem:[%s347 + $0xc0] sm:$0xff]
                  %374 = vst [vmem:[%s348 + $0x60] sm:$0xff] %v373
                  %v375 = vld [vmem:[%s347 + $0xd0] sm:$0xff]
                  %376 = vst [vmem:[%s348 + $0x68] sm:$0xff] %v375
                  %v377 = vld [vmem:[%s347 + $0xe0] sm:$0xff]
                  %378 = vst [vmem:[%s348 + $0x70] sm:$0xff] %v377
                  %v379 = vld [vmem:[%s347 + $0xf0] sm:$0xff]
                  %380 = vst [vmem:[%s348 + $0x78] sm:$0xff] %v379
                $region90: #{positionwise_feedforward.1} parent=84 // loop_footer
                  %s346 = sadd.s32 1, %s342
                $region91: #{positionwise_feedforward.1} parent=84 // loop_footer_branch
                  %341 = sbr.rel target = $region87
                $region92: #{positionwise_feedforward.1} parent=84 // loop_exit
                  _
              $region85: #{positionwise_feedforward.1} parent=69 // pred_fallthru
                _
              // Predicated region
              $region93: #{positionwise_feedforward.1} parent=69 // pred_check
                _
              $region94: #{positionwise_feedforward.1} parent=69 // pred_check_branch
                %382 = sbr.rel target = $region96
              $region95: #{positionwise_feedforward.1} parent=69 // pred_region
                _
              $region96: #{positionwise_feedforward.1} parent=69 // pred_fallthru
                _
            $region70: #{positionwise_feedforward.1} parent=65 // pred_fallthru
              _
            // Predicated region
            $region71: #{positionwise_feedforward.1} parent=65 // pred_check
              _
            $region72: #{positionwise_feedforward.1} parent=65 // pred_check_branch
              %296 = sbr.rel target = $region74
            $region73: #{positionwise_feedforward.1} parent=65 // pred_region
              %s298 = ssub.s32 256, 1
              loop: start=0, step=1, limit=1
              $region75: #{positionwise_feedforward.1} parent=73 // loop_pre_header
                _
              $region76: #{positionwise_feedforward.1} parent=73 // loop_header
                %s300 = sphi 0, %s304
                %p301 = scmp.ge.s32.totalorder %s300, 1
                %s305 = sphi %s290, %s290
                %s306 = sphi %s288, %s288
              $region77: #{positionwise_feedforward.1} parent=73 // loop_header_branch
                %303 = sbr.rel (%p301) target = $region81
              $region78: #{positionwise_feedforward.1} parent=73 // loop_body
                %v307 = vld [vmem:[%s305] sm:%s298]
                %308 = vst [vmem:[%s306] sm:%s298] %v307
                %v309 = vld [vmem:[%s305 + $0x10] sm:%s298]
                %310 = vst [vmem:[%s306 + $0x8] sm:%s298] %v309
                %v311 = vld [vmem:[%s305 + $0x20] sm:%s298]
                %312 = vst [vmem:[%s306 + $0x10] sm:%s298] %v311
                %v313 = vld [vmem:[%s305 + $0x30] sm:%s298]
                %314 = vst [vmem:[%s306 + $0x18] sm:%s298] %v313
                %v315 = vld [vmem:[%s305 + $0x40] sm:%s298]
                %316 = vst [vmem:[%s306 + $0x20] sm:%s298] %v315
                %v317 = vld [vmem:[%s305 + $0x50] sm:%s298]
                %318 = vst [vmem:[%s306 + $0x28] sm:%s298] %v317
                %v319 = vld [vmem:[%s305 + $0x60] sm:%s298]
                %320 = vst [vmem:[%s306 + $0x30] sm:%s298] %v319
                %v321 = vld [vmem:[%s305 + $0x70] sm:%s298]
                %322 = vst [vmem:[%s306 + $0x38] sm:%s298] %v321
                %v323 = vld [vmem:[%s305 + $0x80] sm:%s298]
                %324 = vst [vmem:[%s306 + $0x40] sm:%s298] %v323
                %v325 = vld [vmem:[%s305 + $0x90] sm:%s298]
                %326 = vst [vmem:[%s306 + $0x48] sm:%s298] %v325
                %v327 = vld [vmem:[%s305 + $0xa0] sm:%s298]
                %328 = vst [vmem:[%s306 + $0x50] sm:%s298] %v327
                %v329 = vld [vmem:[%s305 + $0xb0] sm:%s298]
                %330 = vst [vmem:[%s306 + $0x58] sm:%s298] %v329
                %v331 = vld [vmem:[%s305 + $0xc0] sm:%s298]
                %332 = vst [vmem:[%s306 + $0x60] sm:%s298] %v331
                %v333 = vld [vmem:[%s305 + $0xd0] sm:%s298]
                %334 = vst [vmem:[%s306 + $0x68] sm:%s298] %v333
                %v335 = vld [vmem:[%s305 + $0xe0] sm:%s298]
                %336 = vst [vmem:[%s306 + $0x70] sm:%s298] %v335
                %v337 = vld [vmem:[%s305 + $0xf0] sm:%s298]
                %338 = vst [vmem:[%s306 + $0x78] sm:%s298] %v337
              $region79: #{positionwise_feedforward.1} parent=73 // loop_footer
                %s304 = sadd.s32 1, %s300
              $region80: #{positionwise_feedforward.1} parent=73 // loop_footer_branch
                %299 = sbr.rel target = $region76
              $region81: #{positionwise_feedforward.1} parent=73 // loop_exit
                _
            $region74: #{positionwise_feedforward.1} parent=65 // pred_fallthru
              _
          $region66: #{positionwise_feedforward.1} parent=61 // pred_fallthru
            _
          %383 = vnop
        $region62: #{positionwise_feedforward.1} parent=15 // pred_fallthru
          _
        // Predicated region
        $region97: #{positionwise_feedforward.1} parent=15 // pred_check
          %p384 = pneg %p120
        $region98: #{positionwise_feedforward.1} parent=15 // pred_check_branch
          %386 = sbr.rel (%p384) target = $region100
        $region99: #{positionwise_feedforward.1} parent=15 // pred_region
          %s387 = smul.u32 16, %s18
          %p388 = scmp.lt.s32.totalorder %s387, 31
          %s389 = scalar_select %p388, %s387, 31
          %s390 = smul.addr %s389, 8
          %s391 = scalar_lea.vmem %s3, %s390
          %s392 = smul.u32 16, %s18
        $region100: #{positionwise_feedforward.1} parent=15 // pred_fallthru
          _
      $region16: #{positionwise_feedforward.1} parent=5 // pred_fallthru
        _
      %p393 = scmp.le.s32.totalorder 1, %s10
      %p394 = scmp.lt.s32.totalorder %s10, 5
      %p395 = pnand %p393, %p394
      %p396 = pneg %p395
      // Predicated region
      $region101: #{positionwise_feedforward.1} parent=5 // pred_check
        _
      $region102: #{positionwise_feedforward.1} parent=5 // pred_check_branch
        %398 = sbr.rel (%p395) target = $region104
      $region103: #{positionwise_feedforward.1} parent=5 // pred_region
        %s399 = ssub.s32 %s10, 1
        %s400 = sand.u32 %s61, 1
        %s401 = sand.u32 %s61, 1
        %s402 = smul.addr %s401, 128
        %s403 = scalar_lea.vmem [#allocation3], %s402
        // Predicated region
        $region105: #{positionwise_feedforward.1} parent=103 // pred_check
          %p404 = pneg %p74
        $region106: #{positionwise_feedforward.1} parent=103 // pred_check_branch
          %406 = sbr.rel (%p404) target = $region108
        $region107: #{positionwise_feedforward.1} parent=103 // pred_region
          _
        $region108: #{positionwise_feedforward.1} parent=103 // pred_fallthru
          _
        %s407 = sand.u32 %s87, 1
        %s408 = sand.u32 %s87, 1
        %s409 = smul.addr %s408, 128
        %s410 = scalar_lea.vmem [#allocation4], %s409
        // Predicated region
        $region109: #{positionwise_feedforward.1} parent=103 // pred_check
          %p411 = pneg %p100
        $region110: #{positionwise_feedforward.1} parent=103 // pred_check_branch
          %413 = sbr.rel (%p411) target = $region112
        $region111: #{positionwise_feedforward.1} parent=103 // pred_region
          _
        $region112: #{positionwise_feedforward.1} parent=103 // pred_fallthru
          _
        %s414 = smul.u32 8, %s19
        %p415 = scmp.lt.s32.totalorder %s414, 15
        %s416 = scalar_select %p415, %s414, 15
        %s417 = smul.addr %s416, 8
        %s418 = scalar_lea.vmem %s0, %s417
        %p419 = pneg %p48
        %p420 = pneg %p45
        %s421 = sand.u32 %s61, 1
        %s422 = sand.u32 %s61, 1
        %s423 = smul.addr %s422, 128
        %s424 = scalar_lea.vmem [#allocation3], %s423
        %p425 = pneg %p74
        %p426 = pneg %p71
        %s427 = sand.u32 %s87, 1
        %s428 = sand.u32 %s87, 1
        %s429 = smul.addr %s428, 128
        %s430 = scalar_lea.vmem [#allocation4], %s429
        %p431 = pneg %p100
        %p432 = pneg %p97
        %s433 = smul.u32 16, %s20
        %p434 = scmp.lt.s32.totalorder %s433, 31
        %s435 = scalar_select %p434, %s433, 31
        %s436 = smul.addr %s435, 8
        %s437 = scalar_lea.vmem %s3, %s436
        %p438 = pneg %p126
        %p439 = pneg %p123
        %p440 = pneg %p152
        %p441 = pneg %p149
        %s442 = smul.u32 8, %s19
        %p443 = scmp.lt.s32.totalorder %s442, 15
        %s444 = scalar_select %p443, %s442, 15
        %s445 = smul.addr %s444, 8
        %s446 = scalar_lea.vmem %s4, %s445
        %s447 = smul.u32 8, %s19
        %p448 = scmp.lt.s32.totalorder %s447, 15
        %s449 = scalar_select %p448, %s447, 15
        %s450 = smul.addr %s449, 8
        %s451 = scalar_lea.vmem %s0, %s450
        %s452 = smul.u32 8, %s19
        %s453 = smul.u32 16, %s20
        %p454 = scmp.lt.s32.totalorder %s453, 31
        %s455 = scalar_select %p454, %s453, 31
        %s456 = smul.addr %s455, 8
        %s457 = scalar_lea.vmem %s3, %s456
        %s458 = smul.u32 16, %s20
        %s459 = smul.u32 8, %s19
        %p460 = scmp.lt.s32.totalorder %s459, 15
        %s461 = scalar_select %p460, %s459, 15
        %s462 = smul.addr %s461, 8
        %s463 = scalar_lea.vmem %s4, %s462
        %s464 = smul.u32 8, %s19
        %v465 = vld [vmem:[%s451] sm:$0xff]
        %v466 = vld [vmem:[%s451 + $0x8] sm:$0xff]
        %v467 = vld [vmem:[%s451 + $0x10] sm:$0xff]
        %v468 = vld [vmem:[%s451 + $0x18] sm:$0xff]
        %v469 = vld [vmem:[%s451 + $0x20] sm:$0xff]
        %v470 = vld [vmem:[%s451 + $0x28] sm:$0xff]
        %v471 = vld [vmem:[%s451 + $0x30] sm:$0xff]
        %v472 = vld [vmem:[%s451 + $0x38] sm:$0xff]
        %v473 = vld [vmem:[%s403] sm:$0xff]
        %v474 = vld [vmem:[%s403 + $0x8] sm:$0xff]
        %v475 = vld [vmem:[%s403 + $0x10] sm:$0xff]
        %v476 = vld [vmem:[%s403 + $0x18] sm:$0xff]
        %v477 = vld [vmem:[%s403 + $0x20] sm:$0xff]
        %v478 = vld [vmem:[%s403 + $0x28] sm:$0xff]
        %v479 = vld [vmem:[%s403 + $0x30] sm:$0xff]
        %v480 = vld [vmem:[%s403 + $0x38] sm:$0xff]
        %v481 = vld [vmem:[%s403 + $0x40] sm:$0xff]
        %v482 = vld [vmem:[%s403 + $0x48] sm:$0xff]
        %v483 = vld [vmem:[%s403 + $0x50] sm:$0xff]
        %v484 = vld [vmem:[%s403 + $0x58] sm:$0xff]
        %v485 = vld [vmem:[%s403 + $0x60] sm:$0xff]
        %v486 = vld [vmem:[%s403 + $0x68] sm:$0xff]
        %v487 = vld [vmem:[%s403 + $0x70] sm:$0xff]
        %v488 = vld [vmem:[%s403 + $0x78] sm:$0xff]
        %489 = vmatprep.subr.mxu0 0.0
        %490 = vmatpush1.msra.mxu0 %v488
        %491 = vmatprep.subr.mxu0 0.0
        %492 = vmatpush1.msra.mxu0 %v487
        %493 = vmatprep.subr.mxu0 0.0
        %494 = vmatpush1.msra.mxu0 %v486
        %495 = vmatprep.subr.mxu0 0.0
        %496 = vmatpush1.msra.mxu0 %v485
        %497 = vmatprep.subr.mxu0 0.0
        %498 = vmatpush1.msra.mxu0 %v484
        %499 = vmatprep.subr.mxu0 0.0
        %500 = vmatpush1.msra.mxu0 %v483
        %501 = vmatprep.subr.mxu0 0.0
        %502 = vmatpush1.msra.mxu0 %v482
        %503 = vmatprep.subr.mxu0 0.0
        %504 = vmatpush1.msra.mxu0 %v481
        %505 = vmatprep.subr.mxu0 0.0
        %506 = vmatpush1.msra.mxu0 %v480
        %507 = vmatprep.subr.mxu0 0.0
        %508 = vmatpush1.msra.mxu0 %v479
        %509 = vmatprep.subr.mxu0 0.0
        %510 = vmatpush1.msra.mxu0 %v478
        %511 = vmatprep.subr.mxu0 0.0
        %512 = vmatpush1.msra.mxu0 %v477
        %513 = vmatprep.subr.mxu0 0.0
        %514 = vmatpush1.msra.mxu0 %v476
        %515 = vmatprep.subr.mxu0 0.0
        %516 = vmatpush1.msra.mxu0 %v475
        %517 = vmatprep.subr.mxu0 0.0
        %518 = vmatpush1.msra.mxu0 %v474
        %519 = vmatprep.subr.mxu0 0.0
        %520 = vmatpush1.msra.mxu0 %v473
        %521 = vmatprep.subr.mxu0 0.0
        %522 = vmatpush2.msra.mxu0 0.0
        %523 = vmatprep.subr.mxu0 0.0
        %524 = vmatpush2.msra.mxu0 0.0
        %525 = vmatprep.subr.mxu0 0.0
        %526 = vmatpush2.msra.mxu0 0.0
        %527 = vmatprep.subr.mxu0 0.0
        %528 = vmatpush2.msra.mxu0 0.0
        %529 = vmatprep.subr.mxu0 0.0
        %530 = vmatpush2.msra.mxu0 0.0
        %531 = vmatprep.subr.mxu0 0.0
        %532 = vmatpush2.msra.mxu0 0.0
        %533 = vmatprep.subr.mxu0 0.0
        %534 = vmatpush2.msra.mxu0 0.0
        %535 = vmatprep.subr.mxu0 0.0
        %536 = vmatpush2.msra.mxu0 0.0
        %537 = vmatprep.subr.mxu0 0.0
        %538 = vmatpush2.msra.mxu0 0.0
        %539 = vmatprep.subr.mxu0 0.0
        %540 = vmatpush2.msra.mxu0 0.0
        %541 = vmatprep.subr.mxu0 0.0
        %542 = vmatpush2.msra.mxu0 0.0
        %543 = vmatprep.subr.mxu0 0.0
        %544 = vmatpush2.msra.mxu0 0.0
        %545 = vmatprep.subr.mxu0 0.0
        %546 = vmatpush2.msra.mxu0 0.0
        %547 = vmatprep.subr.mxu0 0.0
        %548 = vmatpush2.msra.mxu0 0.0
        %549 = vmatprep.subr.mxu0 0.0
        %550 = vmatpush2.msra.mxu0 0.0
        %551 = vmatprep.subr.mxu0 0.0
        %552 = vmatpush2.msra.mxu0 0.0
        %553 = vmatprep.mubr.f32.mxu0 0.0
        %554 = vmatmul.mubr.f32.gmra.mxu0 %v465
        %v555 = vpop.f32.mrf.mxu0
        %v556 = vadd.f32 0.0, %v555
        %v557 = vpop.f32.mrf.mxu0
        %558 = vmatprep.mubr.f32.mxu0 0.0
        %559 = vmatmul.mubr.f32.gmra.mxu0 %v466
        %v560 = vpop.f32.mrf.mxu0
        %v561 = vadd.f32 0.0, %v560
        %v562 = vpop.f32.mrf.mxu0
        %563 = vmatprep.mubr.f32.mxu0 0.0
        %564 = vmatmul.mubr.f32.gmra.mxu0 %v467
        %v565 = vpop.f32.mrf.mxu0
        %v566 = vadd.f32 0.0, %v565
        %v567 = vpop.f32.mrf.mxu0
        %568 = vmatprep.mubr.f32.mxu0 0.0
        %569 = vmatmul.mubr.f32.gmra.mxu0 %v468
        %v570 = vpop.f32.mrf.mxu0
        %v571 = vadd.f32 0.0, %v570
        %v572 = vpop.f32.mrf.mxu0
        %573 = vmatprep.mubr.f32.mxu0 0.0
        %574 = vmatmul.mubr.f32.gmra.mxu0 %v469
        %v575 = vpop.f32.mrf.mxu0
        %v576 = vadd.f32 0.0, %v575
        %v577 = vpop.f32.mrf.mxu0
        %578 = vmatprep.mubr.f32.mxu0 0.0
        %579 = vmatmul.mubr.f32.gmra.mxu0 %v470
        %v580 = vpop.f32.mrf.mxu0
        %v581 = vadd.f32 0.0, %v580
        %v582 = vpop.f32.mrf.mxu0
        %583 = vmatprep.mubr.f32.mxu0 0.0
        %584 = vmatmul.mubr.f32.gmra.mxu0 %v471
        %v585 = vpop.f32.mrf.mxu0
        %v586 = vadd.f32 0.0, %v585
        %v587 = vpop.f32.mrf.mxu0
        %588 = vmatprep.mubr.f32.mxu0 0.0
        %589 = vmatmul.mubr.f32.gmra.mxu0 %v472
        %v590 = vpop.f32.mrf.mxu0
        %v591 = vadd.f32 0.0, %v590
        %v592 = vpop.f32.mrf.mxu0
        %593 = vdwg.mxu0
        %v594 = vld [vmem:[%s410] sm:$0xff]
        %v595 = vld [vmem:[%s410 + $0x8] sm:$0xff]
        %v596 = vld [vmem:[%s410 + $0x10] sm:$0xff]
        %v597 = vld [vmem:[%s410 + $0x18] sm:$0xff]
        %v598 = vld [vmem:[%s410 + $0x20] sm:$0xff]
        %v599 = vld [vmem:[%s410 + $0x28] sm:$0xff]
        %v600 = vld [vmem:[%s410 + $0x30] sm:$0xff]
        %v601 = vld [vmem:[%s410 + $0x38] sm:$0xff]
        %v602 = vld [vmem:[%s410 + $0x40] sm:$0xff]
        %v603 = vld [vmem:[%s410 + $0x48] sm:$0xff]
        %v604 = vld [vmem:[%s410 + $0x50] sm:$0xff]
        %v605 = vld [vmem:[%s410 + $0x58] sm:$0xff]
        %v606 = vld [vmem:[%s410 + $0x60] sm:$0xff]
        %v607 = vld [vmem:[%s410 + $0x68] sm:$0xff]
        %v608 = vld [vmem:[%s410 + $0x70] sm:$0xff]
        %v609 = vld [vmem:[%s410 + $0x78] sm:$0xff]
        %610 = vmatprep.subr.mxu0 0.0
        %611 = vmatpush1.msra.mxu0 %v609
        %612 = vmatprep.subr.mxu0 0.0
        %613 = vmatpush1.msra.mxu0 %v608
        %614 = vmatprep.subr.mxu0 0.0
        %615 = vmatpush1.msra.mxu0 %v607
        %616 = vmatprep.subr.mxu0 0.0
        %617 = vmatpush1.msra.mxu0 %v606
        %618 = vmatprep.subr.mxu0 0.0
        %619 = vmatpush1.msra.mxu0 %v605
        %620 = vmatprep.subr.mxu0 0.0
        %621 = vmatpush1.msra.mxu0 %v604
        %622 = vmatprep.subr.mxu0 0.0
        %623 = vmatpush1.msra.mxu0 %v603
        %624 = vmatprep.subr.mxu0 0.0
        %625 = vmatpush1.msra.mxu0 %v602
        %626 = vmatprep.subr.mxu0 0.0
        %627 = vmatpush1.msra.mxu0 %v601
        %628 = vmatprep.subr.mxu0 0.0
        %629 = vmatpush1.msra.mxu0 %v600
        %630 = vmatprep.subr.mxu0 0.0
        %631 = vmatpush1.msra.mxu0 %v599
        %632 = vmatprep.subr.mxu0 0.0
        %633 = vmatpush1.msra.mxu0 %v598
        %634 = vmatprep.subr.mxu0 0.0
        %635 = vmatpush1.msra.mxu0 %v597
        %636 = vmatprep.subr.mxu0 0.0
        %637 = vmatpush1.msra.mxu0 %v596
        %638 = vmatprep.subr.mxu0 0.0
        %639 = vmatpush1.msra.mxu0 %v595
        %640 = vmatprep.subr.mxu0 0.0
        %641 = vmatpush1.msra.mxu0 %v594
        %642 = vmatprep.subr.mxu0 0.0
        %643 = vmatpush2.msra.mxu0 0.0
        %644 = vmatprep.subr.mxu0 0.0
        %645 = vmatpush2.msra.mxu0 0.0
        %646 = vmatprep.subr.mxu0 0.0
        %647 = vmatpush2.msra.mxu0 0.0
        %648 = vmatprep.subr.mxu0 0.0
        %649 = vmatpush2.msra.mxu0 0.0
        %650 = vmatprep.subr.mxu0 0.0
        %651 = vmatpush2.msra.mxu0 0.0
        %652 = vmatprep.subr.mxu0 0.0
        %653 = vmatpush2.msra.mxu0 0.0
        %654 = vmatprep.subr.mxu0 0.0
        %655 = vmatpush2.msra.mxu0 0.0
        %656 = vmatprep.subr.mxu0 0.0
        %657 = vmatpush2.msra.mxu0 0.0
        %658 = vmatprep.subr.mxu0 0.0
        %659 = vmatpush2.msra.mxu0 0.0
        %660 = vmatprep.subr.mxu0 0.0
        %661 = vmatpush2.msra.mxu0 0.0
        %662 = vmatprep.subr.mxu0 0.0
        %663 = vmatpush2.msra.mxu0 0.0
        %664 = vmatprep.subr.mxu0 0.0
        %665 = vmatpush2.msra.mxu0 0.0
        %666 = vmatprep.subr.mxu0 0.0
        %667 = vmatpush2.msra.mxu0 0.0
        %668 = vmatprep.subr.mxu0 0.0
        %669 = vmatpush2.msra.mxu0 0.0
        %670 = vmatprep.subr.mxu0 0.0
        %671 = vmatpush2.msra.mxu0 0.0
        %672 = vmatprep.subr.mxu0 0.0
        %673 = vmatpush2.msra.mxu0 0.0
        %674 = vmatprep.mubr.f32.mxu0 0.0
        %675 = vmatmul.mubr.f32.gmra.mxu0 %v465
        %v676 = vpop.f32.mrf.mxu0
        %v677 = vadd.f32 0.0, %v676
        %v678 = vpop.f32.mrf.mxu0
        %679 = vmatprep.mubr.f32.mxu0 0.0
        %680 = vmatmul.mubr.f32.gmra.mxu0 %v466
        %v681 = vpop.f32.mrf.mxu0
        %v682 = vadd.f32 0.0, %v681
        %v683 = vpop.f32.mrf.mxu0
        %684 = vmatprep.mubr.f32.mxu0 0.0
        %685 = vmatmul.mubr.f32.gmra.mxu0 %v467
        %v686 = vpop.f32.mrf.mxu0
        %v687 = vadd.f32 0.0, %v686
        %v688 = vpop.f32.mrf.mxu0
        %689 = vmatprep.mubr.f32.mxu0 0.0
        %690 = vmatmul.mubr.f32.gmra.mxu0 %v468
        %v691 = vpop.f32.mrf.mxu0
        %v692 = vadd.f32 0.0, %v691
        %v693 = vpop.f32.mrf.mxu0
        %694 = vmatprep.mubr.f32.mxu0 0.0
        %695 = vmatmul.mubr.f32.gmra.mxu0 %v469
        %v696 = vpop.f32.mrf.mxu0
        %v697 = vadd.f32 0.0, %v696
        %v698 = vpop.f32.mrf.mxu0
        %699 = vmatprep.mubr.f32.mxu0 0.0
        %700 = vmatmul.mubr.f32.gmra.mxu0 %v470
        %v701 = vpop.f32.mrf.mxu0
        %v702 = vadd.f32 0.0, %v701
        %v703 = vpop.f32.mrf.mxu0
        %704 = vmatprep.mubr.f32.mxu0 0.0
        %705 = vmatmul.mubr.f32.gmra.mxu0 %v471
        %v706 = vpop.f32.mrf.mxu0
        %v707 = vadd.f32 0.0, %v706
        %v708 = vpop.f32.mrf.mxu0
        %709 = vmatprep.mubr.f32.mxu0 0.0
        %710 = vmatmul.mubr.f32.gmra.mxu0 %v472
        %v711 = vpop.f32.mrf.mxu0
        %v712 = vadd.f32 0.0, %v711
        %v713 = vpop.f32.mrf.mxu0
        %714 = vdwg.mxu0
        %v715 = vxor.u32 %v556, 2147483648
        %v716 = vxor.u32 %v561, 2147483648
        %v717 = vxor.u32 %v566, 2147483648
        %v718 = vxor.u32 %v571, 2147483648
        %v719 = vxor.u32 %v576, 2147483648
        %v720 = vxor.u32 %v581, 2147483648
        %v721 = vxor.u32 %v586, 2147483648
        %v722 = vxor.u32 %v591, 2147483648
        %v723 = vmul.f32 %v715, 1.442695
        %v724 = vpow.pop %v723
        %v725 = vmul.f32 %v716, 1.442695
        %v726 = vpow.pop %v725
        %v727 = vmul.f32 %v717, 1.442695
        %v728 = vpow.pop %v727
        %v729 = vmul.f32 %v718, 1.442695
        %v730 = vpow.pop %v729
        %v731 = vmul.f32 %v719, 1.442695
        %v732 = vpow.pop %v731
        %v733 = vmul.f32 %v720, 1.442695
        %v734 = vpow.pop %v733
        %v735 = vmul.f32 %v721, 1.442695
        %v736 = vpow.pop %v735
        %v737 = vmul.f32 %v722, 1.442695
        %v738 = vpow.pop %v737
        %v739 = vadd.f32 %v724, 1.0
        %v740 = vadd.f32 %v726, 1.0
        %v741 = vadd.f32 %v728, 1.0
        %v742 = vadd.f32 %v730, 1.0
        %v743 = vadd.f32 %v732, 1.0
        %v744 = vadd.f32 %v734, 1.0
        %v745 = vadd.f32 %v736, 1.0
        %v746 = vadd.f32 %v738, 1.0
        %v747 = vrcp.pop %v739
        %v748 = vmul.f32 1.0, %v747
        %v749 = vrcp.pop %v740
        %v750 = vmul.f32 1.0, %v749
        %v751 = vrcp.pop %v741
        %v752 = vmul.f32 1.0, %v751
        %v753 = vrcp.pop %v742
        %v754 = vmul.f32 1.0, %v753
        %v755 = vrcp.pop %v743
        %v756 = vmul.f32 1.0, %v755
        %v757 = vrcp.pop %v744
        %v758 = vmul.f32 1.0, %v757
        %v759 = vrcp.pop %v745
        %v760 = vmul.f32 1.0, %v759
        %v761 = vrcp.pop %v746
        %v762 = vmul.f32 1.0, %v761
        %v763 = vmul.f32 %v556, %v748
        %v764 = vmul.f32 %v561, %v750
        %v765 = vmul.f32 %v566, %v752
        %v766 = vmul.f32 %v571, %v754
        %v767 = vmul.f32 %v576, %v756
        %v768 = vmul.f32 %v581, %v758
        %v769 = vmul.f32 %v586, %v760
        %v770 = vmul.f32 %v591, %v762
        %v771 = vmul.f32 %v763, %v677
        %v772 = vmul.f32 %v764, %v682
        %v773 = vmul.f32 %v765, %v687
        %v774 = vmul.f32 %v766, %v692
        %v775 = vmul.f32 %v767, %v697
        %v776 = vmul.f32 %v768, %v702
        %v777 = vmul.f32 %v769, %v707
        %v778 = vmul.f32 %v770, %v712
        %v779 = vld [vmem:[%s457] sm:$0xff]
        %v780 = vld [vmem:[%s457 + $0x8] sm:$0xff]
        %v781 = vld [vmem:[%s457 + $0x10] sm:$0xff]
        %v782 = vld [vmem:[%s457 + $0x18] sm:$0xff]
        %v783 = vld [vmem:[%s457 + $0x20] sm:$0xff]
        %v784 = vld [vmem:[%s457 + $0x28] sm:$0xff]
        %v785 = vld [vmem:[%s457 + $0x30] sm:$0xff]
        %v786 = vld [vmem:[%s457 + $0x38] sm:$0xff]
        %v787 = vld [vmem:[%s457 + $0x40] sm:$0xff]
        %v788 = vld [vmem:[%s457 + $0x48] sm:$0xff]
        %v789 = vld [vmem:[%s457 + $0x50] sm:$0xff]
        %v790 = vld [vmem:[%s457 + $0x58] sm:$0xff]
        %v791 = vld [vmem:[%s457 + $0x60] sm:$0xff]
        %v792 = vld [vmem:[%s457 + $0x68] sm:$0xff]
        %v793 = vld [vmem:[%s457 + $0x70] sm:$0xff]
        %v794 = vld [vmem:[%s457 + $0x78] sm:$0xff]
        %795 = vmatprep.subr.mxu0 0.0
        %796 = vmatpush1.msra.mxu0 %v794
        %797 = vmatprep.subr.mxu0 0.0
        %798 = vmatpush1.msra.mxu0 %v793
        %799 = vmatprep.subr.mxu0 0.0
        %800 = vmatpush1.msra.mxu0 %v792
        %801 = vmatprep.subr.mxu0 0.0
        %802 = vmatpush1.msra.mxu0 %v791
        %803 = vmatprep.subr.mxu0 0.0
        %804 = vmatpush1.msra.mxu0 %v790
        %805 = vmatprep.subr.mxu0 0.0
        %806 = vmatpush1.msra.mxu0 %v789
        %807 = vmatprep.subr.mxu0 0.0
        %808 = vmatpush1.msra.mxu0 %v788
        %809 = vmatprep.subr.mxu0 0.0
        %810 = vmatpush1.msra.mxu0 %v787
        %811 = vmatprep.subr.mxu0 0.0
        %812 = vmatpush1.msra.mxu0 %v786
        %813 = vmatprep.subr.mxu0 0.0
        %814 = vmatpush1.msra.mxu0 %v785
        %815 = vmatprep.subr.mxu0 0.0
        %816 = vmatpush1.msra.mxu0 %v784
        %817 = vmatprep.subr.mxu0 0.0
        %818 = vmatpush1.msra.mxu0 %v783
        %819 = vmatprep.subr.mxu0 0.0
        %820 = vmatpush1.msra.mxu0 %v782
        %821 = vmatprep.subr.mxu0 0.0
        %822 = vmatpush1.msra.mxu0 %v781
        %823 = vmatprep.subr.mxu0 0.0
        %824 = vmatpush1.msra.mxu0 %v780
        %825 = vmatprep.subr.mxu0 0.0
        %826 = vmatpush1.msra.mxu0 %v779
        %827 = vmatprep.subr.mxu0 0.0
        %828 = vmatpush2.msra.mxu0 0.0
        %829 = vmatprep.subr.mxu0 0.0
        %830 = vmatpush2.msra.mxu0 0.0
        %831 = vmatprep.subr.mxu0 0.0
        %832 = vmatpush2.msra.mxu0 0.0
        %833 = vmatprep.subr.mxu0 0.0
        %834 = vmatpush2.msra.mxu0 0.0
        %835 = vmatprep.subr.mxu0 0.0
        %836 = vmatpush2.msra.mxu0 0.0
        %837 = vmatprep.subr.mxu0 0.0
        %838 = vmatpush2.msra.mxu0 0.0
        %839 = vmatprep.subr.mxu0 0.0
        %840 = vmatpush2.msra.mxu0 0.0
        %841 = vmatprep.subr.mxu0 0.0
        %842 = vmatpush2.msra.mxu0 0.0
        %843 = vmatprep.subr.mxu0 0.0
        %844 = vmatpush2.msra.mxu0 0.0
        %845 = vmatprep.subr.mxu0 0.0
        %846 = vmatpush2.msra.mxu0 0.0
        %847 = vmatprep.subr.mxu0 0.0
        %848 = vmatpush2.msra.mxu0 0.0
        %849 = vmatprep.subr.mxu0 0.0
        %850 = vmatpush2.msra.mxu0 0.0
        %851 = vmatprep.subr.mxu0 0.0
        %852 = vmatpush2.msra.mxu0 0.0
        %853 = vmatprep.subr.mxu0 0.0
        %854 = vmatpush2.msra.mxu0 0.0
        %855 = vmatprep.subr.mxu0 0.0
        %856 = vmatpush2.msra.mxu0 0.0
        %857 = vmatprep.subr.mxu0 0.0
        %858 = vmatpush2.msra.mxu0 0.0
        %859 = vmatprep.mubr.f32.mxu0 0.0
        %860 = vmatmul.mubr.f32.gmra.mxu0 %v771
        %v861 = vpop.f32.mrf.mxu0
        %v862 = vadd.f32 0.0, %v861
        %v863 = vpop.f32.mrf.mxu0
        %864 = vmatprep.mubr.f32.mxu0 0.0
        %865 = vmatmul.mubr.f32.gmra.mxu0 %v772
        %v866 = vpop.f32.mrf.mxu0
        %v867 = vadd.f32 0.0, %v866
        %v868 = vpop.f32.mrf.mxu0
        %869 = vmatprep.mubr.f32.mxu0 0.0
        %870 = vmatmul.mubr.f32.gmra.mxu0 %v773
        %v871 = vpop.f32.mrf.mxu0
        %v872 = vadd.f32 0.0, %v871
        %v873 = vpop.f32.mrf.mxu0
        %874 = vmatprep.mubr.f32.mxu0 0.0
        %875 = vmatmul.mubr.f32.gmra.mxu0 %v774
        %v876 = vpop.f32.mrf.mxu0
        %v877 = vadd.f32 0.0, %v876
        %v878 = vpop.f32.mrf.mxu0
        %879 = vmatprep.mubr.f32.mxu0 0.0
        %880 = vmatmul.mubr.f32.gmra.mxu0 %v775
        %v881 = vpop.f32.mrf.mxu0
        %v882 = vadd.f32 0.0, %v881
        %v883 = vpop.f32.mrf.mxu0
        %884 = vmatprep.mubr.f32.mxu0 0.0
        %885 = vmatmul.mubr.f32.gmra.mxu0 %v776
        %v886 = vpop.f32.mrf.mxu0
        %v887 = vadd.f32 0.0, %v886
        %v888 = vpop.f32.mrf.mxu0
        %889 = vmatprep.mubr.f32.mxu0 0.0
        %890 = vmatmul.mubr.f32.gmra.mxu0 %v777
        %v891 = vpop.f32.mrf.mxu0
        %v892 = vadd.f32 0.0, %v891
        %v893 = vpop.f32.mrf.mxu0
        %894 = vmatprep.mubr.f32.mxu0 0.0
        %895 = vmatmul.mubr.f32.gmra.mxu0 %v778
        %v896 = vpop.f32.mrf.mxu0
        %v897 = vadd.f32 0.0, %v896
        %v898 = vpop.f32.mrf.mxu0
        %899 = vdwg.mxu0
        %p900 = scmp.eq.s32.totalorder %s20, 0
        // Predicated region
        $region113: #{positionwise_feedforward.1} parent=103 // pred_check
          %p901 = pneg %p900
        $region114: #{positionwise_feedforward.1} parent=103 // pred_check_branch
          %903 = sbr.rel (%p901) target = $region116
        $region115: #{positionwise_feedforward.1} parent=103 // pred_region
          %904 = vst [vmem:[#allocation2] sm:$0xff] 0.0
          %905 = vst [vmem:[#allocation2 + $0x8] sm:$0xff] 0.0
          %906 = vst [vmem:[#allocation2 + $0x10] sm:$0xff] 0.0
          %907 = vst [vmem:[#allocation2 + $0x18] sm:$0xff] 0.0
          %908 = vst [vmem:[#allocation2 + $0x20] sm:$0xff] 0.0
          %909 = vst [vmem:[#allocation2 + $0x28] sm:$0xff] 0.0
          %910 = vst [vmem:[#allocation2 + $0x30] sm:$0xff] 0.0
          %911 = vst [vmem:[#allocation2 + $0x38] sm:$0xff] 0.0
        $region116: #{positionwise_feedforward.1} parent=103 // pred_fallthru
          _
        %v912 = vld [vmem:[#allocation2] sm:$0xff]
        %v913 = vld [vmem:[#allocation2 + $0x8] sm:$0xff]
        %v914 = vld [vmem:[#allocation2 + $0x10] sm:$0xff]
        %v915 = vld [vmem:[#allocation2 + $0x18] sm:$0xff]
        %v916 = vld [vmem:[#allocation2 + $0x20] sm:$0xff]
        %v917 = vld [vmem:[#allocation2 + $0x28] sm:$0xff]
        %v918 = vld [vmem:[#allocation2 + $0x30] sm:$0xff]
        %v919 = vld [vmem:[#allocation2 + $0x38] sm:$0xff]
        %v920 = vadd.f32 %v912, %v862
        %v921 = vadd.f32 %v913, %v867
        %v922 = vadd.f32 %v914, %v872
        %v923 = vadd.f32 %v915, %v877
        %v924 = vadd.f32 %v916, %v882
        %v925 = vadd.f32 %v917, %v887
        %v926 = vadd.f32 %v918, %v892
        %v927 = vadd.f32 %v919, %v897
        %928 = vst [vmem:[#allocation2] sm:$0xff] %v920
        %929 = vst [vmem:[#allocation2 + $0x8] sm:$0xff] %v921
        %930 = vst [vmem:[#allocation2 + $0x10] sm:$0xff] %v922
        %931 = vst [vmem:[#allocation2 + $0x18] sm:$0xff] %v923
        %932 = vst [vmem:[#allocation2 + $0x20] sm:$0xff] %v924
        %933 = vst [vmem:[#allocation2 + $0x28] sm:$0xff] %v925
        %934 = vst [vmem:[#allocation2 + $0x30] sm:$0xff] %v926
        %935 = vst [vmem:[#allocation2 + $0x38] sm:$0xff] %v927
        %p936 = scmp.eq.s32.totalorder %s20, 1
        // Predicated region
        $region117: #{positionwise_feedforward.1} parent=103 // pred_check
          %p937 = pneg %p936
        $region118: #{positionwise_feedforward.1} parent=103 // pred_check_branch
          %939 = sbr.rel (%p937) target = $region120
        $region119: #{positionwise_feedforward.1} parent=103 // pred_region
          %v940 = vld [vmem:[#allocation2] sm:$0xff]
          %v941 = vld [vmem:[#allocation2 + $0x8] sm:$0xff]
          %v942 = vld [vmem:[#allocation2 + $0x10] sm:$0xff]
          %v943 = vld [vmem:[#allocation2 + $0x18] sm:$0xff]
          %v944 = vld [vmem:[#allocation2 + $0x20] sm:$0xff]
          %v945 = vld [vmem:[#allocation2 + $0x28] sm:$0xff]
          %v946 = vld [vmem:[#allocation2 + $0x30] sm:$0xff]
          %v947 = vld [vmem:[#allocation2 + $0x38] sm:$0xff]
          %948 = vst [vmem:[%s463] sm:$0xff] %v940
          %949 = vst [vmem:[%s463 + $0x8] sm:$0xff] %v941
          %950 = vst [vmem:[%s463 + $0x10] sm:$0xff] %v942
          %951 = vst [vmem:[%s463 + $0x18] sm:$0xff] %v943
          %952 = vst [vmem:[%s463 + $0x20] sm:$0xff] %v944
          %953 = vst [vmem:[%s463 + $0x28] sm:$0xff] %v945
          %954 = vst [vmem:[%s463 + $0x30] sm:$0xff] %v946
          %955 = vst [vmem:[%s463 + $0x38] sm:$0xff] %v947
        $region120: #{positionwise_feedforward.1} parent=103 // pred_fallthru
          _
        %s956 = smul.u32 8, %s19
        %p957 = scmp.lt.s32.totalorder %s956, 15
        %s958 = scalar_select %p957, %s956, 15
        %s959 = smul.addr %s958, 8
        %s960 = scalar_lea.vmem %s4, %s959
        // Predicated region
        $region121: #{positionwise_feedforward.1} parent=103 // pred_check
          %p961 = pneg %p149
        $region122: #{positionwise_feedforward.1} parent=103 // pred_check_branch
          %963 = sbr.rel (%p961) target = $region124
        $region123: #{positionwise_feedforward.1} parent=103 // pred_region
          %s964 = smul.u32 8, %s19
        $region124: #{positionwise_feedforward.1} parent=103 // pred_fallthru
          _
      $region104: #{positionwise_feedforward.1} parent=5 // pred_fallthru
        _
      %p965 = scmp.le.s32.totalorder 2, %s10
      // Predicated region
      $region125: #{positionwise_feedforward.1} parent=5 // pred_check
        %p966 = pneg %p965
      $region126: #{positionwise_feedforward.1} parent=5 // pred_check_branch
        %968 = sbr.rel (%p966) target = $region128
      $region127: #{positionwise_feedforward.1} parent=5 // pred_region
        %s969 = ssub.s32 %s10, 2
        // Predicated region
        $region129: #{positionwise_feedforward.1} parent=127 // pred_check
          %p970 = pneg %p155
        $region130: #{positionwise_feedforward.1} parent=127 // pred_check_branch
          %972 = sbr.rel (%p970) target = $region132
        $region131: #{positionwise_feedforward.1} parent=127 // pred_region
          %s973 = smul.u32 8, %s21
          %p974 = scmp.lt.s32.totalorder %s973, 15
          %s975 = scalar_select %p974, %s973, 15
          %s976 = smul.addr %s975, 8
          %s977 = scalar_lea.vmem %s4, %s976
        $region132: #{positionwise_feedforward.1} parent=127 // pred_fallthru
          _
      $region128: #{positionwise_feedforward.1} parent=5 // pred_fallthru
        _
    $region6: #{positionwise_feedforward.1} parent=1 // loop_footer
      %s14 = sadd.s32 1, %s10
    $region7: #{positionwise_feedforward.1} parent=1 // loop_footer_branch
      %9 = sbr.rel target = $region3
    $region8: #{positionwise_feedforward.1} parent=1 // loop_exit
      _

</llo_original>
